<compile_context>
chip_gen: v5e
topology: v5e:2x2
jax: 0.10.0
libtpu: 0.0.40
codegen_flags: <defaults>
</compile_context>

<pallas_src>
import jax
import jax.numpy as jnp
from jax.experimental import pallas as pl
from jax.experimental.pallas import tpu as pltpu


def _fusion_kernel(obj_flat_ref, obj_mean_ref, ev_ref,
                   wq_ref, bq_ref, wk_ref, bk_ref, ws_ref, bs_ref, out_ref):
    # obj_flat_ref: [R, S*Cq]  (R = B*N, lane-dense view of object_summaries)
    # obj_mean_ref: [R, Cq]    (object_summaries.mean(dim=2), row-flattened)
    # ev_ref      : [R, C]     (spatially pooled event feature, broadcast per row)
    # wq_ref: [Cq, C]  bq_ref: [1, C]    (query_proj)
    # wk_ref: [C,  C]  bk_ref: [1, C]    (key_proj)
    # ws_ref: [1,  C]  bs_ref: (1,) f32 in SMEM   (score_proj as a row vector)
    # out_ref: [R, S*Cq]

    # key_proj on the pooled event feature (one MXU pass over all rows)
    event_key = jnp.dot(ev_ref[...], wk_ref[...],
                        preferred_element_type=jnp.float32) + bk_ref[...]      # [R, C]

    # query_proj over all B*N rows at once (better MXU row occupancy)
    obj_query = jnp.dot(obj_mean_ref[...], wq_ref[...],
                        preferred_element_type=jnp.float32) + bq_ref[...]      # [R, C]

    # score_proj (C -> 1): VPU multiply + lane (XLU) reduce, not a 1-col MXU matmul
    prod = obj_query * event_key                                               # [R, C]
    score = jnp.tanh(jnp.sum(prod * ws_ref[...], axis=-1, keepdims=True)
                     + bs_ref[0])                                              # [R, 1]
    weight = jax.nn.sigmoid(score)                                             # [R, 1]

    # Lane-dense gated store over the flat [R, S*Cq] view.
    out_ref[...] = (obj_flat_ref[...] * weight).astype(out_ref.dtype)


def object_event_fusion(object_summaries, event_feat, params):
    """object_summaries: [B, N, S, C+1] f32, event_feat: [B, C, H, W] f32."""
    B, N, S, Cq = object_summaries.shape
    _, C, H, W = event_feat.shape
    assert Cq == C + 1, "query_proj is Linear(embed_dim+1, embed_dim)"
    R = B * N

    # ---- Wrapper-side glue (layout-only reshapes + tiny reductions XLA fuses) ----
    # Lane-dense flat view of the big tensor: merging contiguous trailing dims is free.
    obj_flat = object_summaries.reshape(R, S * Cq)                  # [R, S*Cq]
    # S-mean side input (review recommendation: precompute instead of 4-D in-kernel).
    obj_mean = object_summaries.mean(axis=2).reshape(R, Cq)         # [R, Cq]
    # adaptive_avg_pool2d(event_feat, 1) == spatial mean; broadcast per (b, n) row so
    # the kernel never touches the HW*C event tensor (and needs no transpose).
    ev_global = jnp.mean(event_feat, axis=(2, 3))                   # [B, C]
    ev_rows = jnp.broadcast_to(ev_global[:, None, :], (B, N, C)).reshape(R, C)

    wq_t = params["wq"].T                       # [Cq, C]
    bq = params["bq"].reshape(1, C)
    wk_t = params["wk"].T                       # [C, C]
    bk = params["bk"].reshape(1, C)
    ws_row = params["ws"].reshape(1, C)         # score weight as a row vector
    bs = params["bs"].reshape(1)                # scalar bias -> SMEM

    out_flat = pl.pallas_call(
        _fusion_kernel,
        out_shape=jax.ShapeDtypeStruct((R, S * Cq), object_summaries.dtype),
        in_specs=[
            pl.BlockSpec(memory_space=pltpu.MemorySpace.VMEM),   # obj_flat
            pl.BlockSpec(memory_space=pltpu.MemorySpace.VMEM),   # obj_mean
            pl.BlockSpec(memory_space=pltpu.MemorySpace.VMEM),   # ev_rows
            pl.BlockSpec(memory_space=pltpu.MemorySpace.VMEM),   # wq
            pl.BlockSpec(memory_space=pltpu.MemorySpace.VMEM),   # bq
            pl.BlockSpec(memory_space=pltpu.MemorySpace.VMEM),   # wk
            pl.BlockSpec(memory_space=pltpu.MemorySpace.VMEM),   # bk
            pl.BlockSpec(memory_space=pltpu.MemorySpace.VMEM),   # ws
            pl.BlockSpec(memory_space=pltpu.MemorySpace.SMEM),   # bs (scalar)
        ],
        out_specs=pl.BlockSpec(memory_space=pltpu.MemorySpace.VMEM),
    )(obj_flat, obj_mean, ev_rows, wq_t, bq, wk_t, bk, ws_row, bs)

    return out_flat.reshape(B, N, S, Cq)


def _reference(object_summaries, event_feat, params):
    """Pure-JAX reference mirroring the PyTorch forward."""
    event_global = jnp.mean(event_feat, axis=(2, 3))                           # [B, C]
    event_key = event_global @ params["wk"].T + params["bk"]                   # [B, C]
    event_key = event_key[:, None, :]                                          # [B, 1, C]
    obj_query = object_summaries.mean(axis=2) @ params["wq"].T + params["bq"]  # [B, N, C]
    score = jnp.tanh((obj_query * event_key) @ params["ws"].T + params["bs"])  # [B, N, 1]
    weight = jax.nn.sigmoid(score)                                             # [B, N, 1]
    return object_summaries * weight[:, :, None, :]                            # [B, N, S, C+1]


def _init_params(key, embed_dim):
    """Deterministic init with PyTorch-Linear-like scaling (uniform +/- 1/sqrt(fan_in))."""
    c = embed_dim
    ks = jax.random.split(key, 6)

    def u(k, shape, fan_in):
        bound = 1.0 / jnp.sqrt(fan_in)
        return jax.random.uniform(k, shape, jnp.float32, -bound, bound)

    return {
        "wq": u(ks[0], (c, c + 1), c + 1), "bq": u(ks[1], (c,), c + 1),
        "wk": u(ks[2], (c, c), c),         "bk": u(ks[3], (c,), c),
        "ws": u(ks[4], (1, c), c),         "bs": u(ks[5], (1,), c),
    }


if __name__ == "__main__":
    B, N, S, H, W = 2, 4, 8, 8, 8
    embed_dim = 32                         # object_summaries channel dim = embed_dim + 1

    key = jax.random.PRNGKey(0)
    k_obj, k_ev, k_par = jax.random.split(key, 3)
    object_summaries = jax.random.normal(k_obj, (B, N, S, embed_dim + 1), jnp.float32)
    event_feat = jax.random.normal(k_ev, (B, embed_dim, H, W), jnp.float32)
    params = _init_params(k_par, embed_dim)

    out = object_event_fusion(object_summaries, event_feat, params)
    out = jax.block_until_ready(out)

    ref = _reference(object_summaries, event_feat, params)
    assert out.shape == ref.shape and out.dtype == ref.dtype
    assert jnp.allclose(out, ref, atol=1e-3, rtol=1e-3), "mismatch vs reference"

    print("KERNEL_OK")
</pallas_src>

<mosaic_0001>
module attributes {stable_mosaic.version = 11 : i64} {
  func.func @_fusion_kernel(%arg0: memref<8x264xf32, #tpu.memory_space<vmem>>, %arg1: memref<8x33xf32, #tpu.memory_space<vmem>>, %arg2: memref<8x32xf32, #tpu.memory_space<vmem>>, %arg3: memref<33x32xf32, #tpu.memory_space<vmem>>, %arg4: memref<1x32xf32, #tpu.memory_space<vmem>>, %arg5: memref<32x32xf32, #tpu.memory_space<vmem>>, %arg6: memref<1x32xf32, #tpu.memory_space<vmem>>, %arg7: memref<1x32xf32, #tpu.memory_space<vmem>>, %arg8: memref<1xf32, #tpu.memory_space<smem>>, %arg9: memref<8x264xf32, #tpu.memory_space<vmem>>) attributes {dimension_semantics = [], scalar_prefetch = 0 : i64, scratch_operands = 0 : i64, tpu.core_type = #tpu.core_type<tc>} {
    %c0 = arith.constant 0 : index
    %c0_0 = arith.constant 0 : index
    %0 = vector.load %arg2[%c0, %c0_0] : memref<8x32xf32, #tpu.memory_space<vmem>>, vector<8x32xf32>
    %c0_1 = arith.constant 0 : index
    %c0_2 = arith.constant 0 : index
    %1 = vector.load %arg5[%c0_1, %c0_2] : memref<32x32xf32, #tpu.memory_space<vmem>>, vector<32x32xf32>
    %cst = arith.constant dense<0.000000e+00> : vector<8x32xf32>
    %2 = tpu.matmul %0, %1, %cst {dimension_numbers = #tpu.dot_dimension_numbers<[1], [0], [0], [1], [0, 0, 1, 1], [], []>} : vector<8x32xf32>, vector<32x32xf32>, vector<8x32xf32> -> vector<8x32xf32>
    %c0_3 = arith.constant 0 : index
    %c0_4 = arith.constant 0 : index
    %3 = vector.load %arg6[%c0_3, %c0_4] : memref<1x32xf32, #tpu.memory_space<vmem>>, vector<1x32xf32>
    %4 = vector.broadcast %3 : vector<1x32xf32> to vector<8x32xf32>
    %5 = arith.addf %2, %4 : vector<8x32xf32>
    %c0_5 = arith.constant 0 : index
    %c0_6 = arith.constant 0 : index
    %6 = vector.load %arg1[%c0_5, %c0_6] : memref<8x33xf32, #tpu.memory_space<vmem>>, vector<8x33xf32>
    %c0_7 = arith.constant 0 : index
    %c0_8 = arith.constant 0 : index
    %7 = vector.load %arg3[%c0_7, %c0_8] : memref<33x32xf32, #tpu.memory_space<vmem>>, vector<33x32xf32>
    %cst_9 = arith.constant dense<0.000000e+00> : vector<8x32xf32>
    %8 = tpu.matmul %6, %7, %cst_9 {dimension_numbers = #tpu.dot_dimension_numbers<[1], [0], [0], [1], [0, 0, 1, 1], [], []>} : vector<8x33xf32>, vector<33x32xf32>, vector<8x32xf32> -> vector<8x32xf32>
    %c0_10 = arith.constant 0 : index
    %c0_11 = arith.constant 0 : index
    %9 = vector.load %arg4[%c0_10, %c0_11] : memref<1x32xf32, #tpu.memory_space<vmem>>, vector<1x32xf32>
    %10 = vector.broadcast %9 : vector<1x32xf32> to vector<8x32xf32>
    %11 = arith.addf %8, %10 : vector<8x32xf32>
    %12 = arith.mulf %11, %5 : vector<8x32xf32>
    %c0_12 = arith.constant 0 : index
    %c0_13 = arith.constant 0 : index
    %13 = vector.load %arg7[%c0_12, %c0_13] : memref<1x32xf32, #tpu.memory_space<vmem>>, vector<1x32xf32>
    %14 = vector.broadcast %13 : vector<1x32xf32> to vector<8x32xf32>
    %15 = arith.mulf %12, %14 : vector<8x32xf32>
    %cst_14 = arith.constant dense<0.000000e+00> : vector<8xf32>
    %16 = vector.multi_reduction <add>, %15, %cst_14 [1] : vector<8x32xf32> to vector<8xf32>
    %17 = vector.shape_cast %16 : vector<8xf32> to vector<8x1xf32>
    %c0_15 = arith.constant 0 : index
    %18 = memref.load %arg8[%c0_15] : memref<1xf32, #tpu.memory_space<smem>>
    %19 = vector.broadcast %18 : f32 to vector<8x1xf32>
    %20 = arith.addf %17, %19 : vector<8x1xf32>
    %21 = math.tanh %20 : vector<8x1xf32>
    %22 = arith.negf %21 : vector<8x1xf32>
    %23 = math.exp %22 : vector<8x1xf32>
    %cst_16 = arith.constant 1.000000e+00 : f32
    %24 = vector.broadcast %cst_16 : f32 to vector<8x1xf32>
    %25 = arith.addf %24, %23 : vector<8x1xf32>
    %26 = arith.divf %24, %25 : vector<8x1xf32>
    %c0_17 = arith.constant 0 : index
    %c0_18 = arith.constant 0 : index
    %27 = vector.load %arg0[%c0_17, %c0_18] : memref<8x264xf32, #tpu.memory_space<vmem>>, vector<8x264xf32>
    %28 = vector.broadcast %26 : vector<8x1xf32> to vector<8x264xf32>
    %29 = arith.mulf %27, %28 : vector<8x264xf32>
    %c0_19 = arith.constant 0 : index
    %c0_20 = arith.constant 0 : index
    %30 = vector.load %arg9[%c0_19, %c0_20] : memref<8x264xf32, #tpu.memory_space<vmem>>, vector<8x264xf32>
    tpu.vector_store %arg9[%c0_19, %c0_20], %29 {strides = array<i32>} : memref<8x264xf32, #tpu.memory_space<vmem>>, vector<8x264xf32>,
    return
  }
}

</mosaic_0001>

<llo_original>
// kernel: tpu_custom_call.1
$region0: #{tpu_custom_call.1}
  #allocation0 [shape = 'u32[]', space=smem, size = 0x4, offset = 0x4, fixed_abs, tag = 'smem constant byte address 0x4 - core index']
  #allocation1 [shape = 'u32[72,128]{1,0:T(1,128)}', space=vmem, size = 0x9000, scoped, tag = 'internal scratch']
  #allocation2 [shape = 'f32[1]{0:T(128)S(6)}', space=smem, size = 0x200, scoped, tag = 'scoped memory for tpu_custom_call.1']
  %s0 = inlined_call_operand.vmem [shape: f32[8,264], index: 0, kind: input, shape index: {}]
  %s1 = inlined_call_operand.vmem [shape: f32[8,33], index: 1, kind: input, shape index: {}]
  %s2 = inlined_call_operand.vmem [shape: f32[8,32], index: 2, kind: input, shape index: {}]
  %s3 = inlined_call_operand.vmem [shape: f32[33,32], index: 3, kind: input, shape index: {}]
  %s4 = inlined_call_operand.vmem [shape: f32[1,32], index: 4, kind: input, shape index: {}]
  %s5 = inlined_call_operand.vmem [shape: f32[32,32], index: 5, kind: input, shape index: {}]
  %s6 = inlined_call_operand.vmem [shape: f32[1,32], index: 6, kind: input, shape index: {}]
  %s7 = inlined_call_operand.vmem [shape: f32[1,32], index: 7, kind: input, shape index: {}]
  %s8 = inlined_call_operand.<no memory space> [shape: f32[1], index: 8, kind: input, shape index: {}]
  %s9 = inlined_call_operand.hbm [shape: f32[8,264], index: 9, kind: output, shape index: {}]
  %s10 = sld [smem:[#allocation0]]
  $region46: #{tpu_custom_call.1} parent=0
    _
  %s12 = ssub.s32 1, %s10
  %s13 = scalar_select 0, %s12, %s10
  %14 = sst [smem:[#allocation2]] %s8
  $region1: #{tpu_custom_call.1} parent=0
    #allocation3 [shape = 'u8[12288]{0}', space=vmem, size = 0x3000, scoped, tag = 'output window, operand 0, single buffered']
    #allocation4 [shape = 's32[1]{0}', space=sflag, size = 0x4, scoped, tag = 'scoped memory for tpu_custom_call.1']
    %15 = vsyncpa [#allocation4], 0
    // Predicated region
    $region2: #{tpu_custom_call.1} parent=1 // pred_check
      _
    $region3: #{tpu_custom_call.1} parent=1 // pred_check_branch
      %17 = sbr.rel (0) target = $region5
    $region4: #{tpu_custom_call.1} parent=1 // pred_region
      _
    $region5: #{tpu_custom_call.1} parent=1 // pred_fallthru
      _
    // Predicated region
    $region6: #{tpu_custom_call.1} parent=1 // pred_check
      _
    $region7: #{tpu_custom_call.1} parent=1 // pred_check_branch
      %19 = sbr.rel (0) target = $region9
    $region8: #{tpu_custom_call.1} parent=1 // pred_region
      _
    $region9: #{tpu_custom_call.1} parent=1 // pred_fallthru
      _
    // Predicated region
    $region10: #{tpu_custom_call.1} parent=1 // pred_check
      _
    $region11: #{tpu_custom_call.1} parent=1 // pred_check_branch
      %21 = sbr.rel (0) target = $region13
    $region12: #{tpu_custom_call.1} parent=1 // pred_region
      _
    $region13: #{tpu_custom_call.1} parent=1 // pred_fallthru
      _
    // Predicated region
    $region14: #{tpu_custom_call.1} parent=1 // pred_check
      _
    $region15: #{tpu_custom_call.1} parent=1 // pred_check_branch
      %23 = sbr.rel (0) target = $region17
    $region16: #{tpu_custom_call.1} parent=1 // pred_region
      _
    $region17: #{tpu_custom_call.1} parent=1 // pred_fallthru
      _
    // Predicated region
    $region18: #{tpu_custom_call.1} parent=1 // pred_check
      _
    $region19: #{tpu_custom_call.1} parent=1 // pred_check_branch
      %25 = sbr.rel (0) target = $region21
    $region20: #{tpu_custom_call.1} parent=1 // pred_region
      _
    $region21: #{tpu_custom_call.1} parent=1 // pred_fallthru
      _
    // Predicated region
    $region22: #{tpu_custom_call.1} parent=1 // pred_check
      _
    $region23: #{tpu_custom_call.1} parent=1 // pred_check_branch
      %27 = sbr.rel (0) target = $region25
    $region24: #{tpu_custom_call.1} parent=1 // pred_region
      _
    $region25: #{tpu_custom_call.1} parent=1 // pred_fallthru
      _
    // Predicated region
    $region26: #{tpu_custom_call.1} parent=1 // pred_check
      _
    $region27: #{tpu_custom_call.1} parent=1 // pred_check_branch
      %29 = sbr.rel (0) target = $region29
    $region28: #{tpu_custom_call.1} parent=1 // pred_region
      _
    $region29: #{tpu_custom_call.1} parent=1 // pred_fallthru
      _
    // Predicated region
    $region30: #{tpu_custom_call.1} parent=1 // pred_check
      _
    $region31: #{tpu_custom_call.1} parent=1 // pred_check_branch
      %31 = sbr.rel (0) target = $region33
    $region32: #{tpu_custom_call.1} parent=1 // pred_region
      _
    $region33: #{tpu_custom_call.1} parent=1 // pred_fallthru
      _
    // Predicated region
    $region34: #{tpu_custom_call.1} parent=1 // pred_check
      _
    $region35: #{tpu_custom_call.1} parent=1 // pred_check_branch
      %33 = sbr.rel (0) target = $region37
    $region36: #{tpu_custom_call.1} parent=1 // pred_region
      _
    $region37: #{tpu_custom_call.1} parent=1 // pred_fallthru
      _
    %v34 = vld [vmem:[%s2] sm:$0xff]
    %v35 = vld [vmem:[%s5] sm:$0xff]
    %v36 = vld [vmem:[%s5 + $0x8] sm:$0xff]
    %v37 = vld [vmem:[%s5 + $0x10] sm:$0xff]
    %v38 = vld [vmem:[%s5 + $0x18] sm:$0xff]
    %v39 = vld [vmem:[%s6] sm:$0x1]
    %v41 = vperm.slane %v39, 0
    %vm43 = vcmask 261120
    %v45 = vsel %vm43, %v34, 0
    %47 = vmatpush.msra.mxu0 0.0
    %48 = vmatpush.msra.mxu0 0.0
    %49 = vmatpush.msra.mxu0 0.0
    %50 = vmatpush.msra.mxu0 0.0
    %51 = vmatpush.msra.mxu0 0.0
    %52 = vmatpush.msra.mxu0 0.0
    %53 = vmatpush.msra.mxu0 0.0
    %54 = vmatpush.msra.mxu0 0.0
    %55 = vmatpush.msra.mxu0 0.0
    %56 = vmatpush.msra.mxu0 0.0
    %57 = vmatpush.msra.mxu0 0.0
    %58 = vmatpush.msra.mxu0 0.0
    %59 = vmatpush.msra.mxu0 %v38
    %60 = vmatpush.msra.mxu0 %v37
    %61 = vmatpush.msra.mxu0 %v36
    %62 = vmatpush.msra.mxu0 %v35
    %63 = vmatmul.f32.gmra.mxu0 %v45
    %v64 = vpop.f32.mrf.mxu0
    %v65 = vadd.f32 %v41, %v64
    %66 = vdwg.mxu0
    %v67 = vld [vmem:[%s1] sm:$0xff]
    %v68 = vld [vmem:[%s3] sm:$0xff]
    %v69 = vld [vmem:[%s3 + $0x8] sm:$0xff]
    %v70 = vld [vmem:[%s3 + $0x10] sm:$0xff]
    %v71 = vld [vmem:[%s3 + $0x18] sm:$0xff]
    %v72 = vld [vmem:[%s3 + $0x20] sm:$0x1]
    %v73 = vld [vmem:[%s4] sm:$0x1]
    %v75 = vperm.slane %v73, 0
    %vm77 = vcmask 269312
    %v79 = vsel %vm77, %v67, 0
    %vm81 = vcmask 1040384
    %v83 = vsel %vm81, %v72, 0
    %85 = vmatpush.msra.mxu0 0.0
    %86 = vmatpush.msra.mxu0 0.0
    %87 = vmatpush.msra.mxu0 0.0
    %88 = vmatpush.msra.mxu0 0.0
    %89 = vmatpush.msra.mxu0 0.0
    %90 = vmatpush.msra.mxu0 0.0
    %91 = vmatpush.msra.mxu0 0.0
    %92 = vmatpush.msra.mxu0 0.0
    %93 = vmatpush.msra.mxu0 0.0
    %94 = vmatpush.msra.mxu0 0.0
    %95 = vmatpush.msra.mxu0 0.0
    %96 = vmatpush.msra.mxu0 %v83
    %97 = vmatpush.msra.mxu0 %v71
    %98 = vmatpush.msra.mxu0 %v70
    %99 = vmatpush.msra.mxu0 %v69
    %100 = vmatpush.msra.mxu0 %v68
    %101 = vmatmul.f32.gmra.mxu0 %v79
    %v102 = vpop.f32.mrf.mxu0
    %v103 = vadd.f32 %v75, %v102
    %104 = vdwg.mxu0
    %v105 = vmul.f32 %v103, %v65
    %v106 = vld [vmem:[%s7] sm:$0x1]
    %v108 = vperm.slane %v106, 0
    %v110 = vmul.f32 %v105, %v108
    %v111 = vsel %vm43, %v110, 0.0
    %112 = vadd.xlane.f32.xlu0 %v111
    %v113 = vpop.xlane.xlu0 %112
    %s114 = sld [smem:[#allocation2]]
    %v115 = vstv %s114
    %v116 = vadd.f32 %v113, %v115
    %v117 = vtanh.pop %v116
    %v118 = vxor.u32 %v117, 2147483648
    %v119 = vmul.f32 %v118, 1.442695
    %v120 = vpow.pop %v119
    %v121 = vadd.f32 %v120, 1.0
    %v122 = vrcp.pop %v121
    %v123 = vmul.f32 %v121, %v122
    %v124 = vsub.f32 1.0, %v123
    %v125 = vmul.f32 %v122, %v124
    %v126 = vadd.f32 %v122, %v125
    %vm127 = vweird.f32 %v121
    %vm128 = vweird.f32 %v122
    %vm129 = vmor %vm127, %vm128
    %v130 = vsel %vm129, %v122, %v126
    %v131 = vand.u32 2147483647, %v121
    %vm132 = vcmp.eq.f32.partialorder %v131, 8.507059e+37
    %v133 = vand.u32 %v121, 2147483648
    %v134 = vor.u32 1.1754944e-38, %v133
    %v135 = vsel %vm132, %v134, %v130
    %v136 = vmul.f32 1.0, %v135
    %v137 = vld [vmem:[%s0] sm:$0xff]
    %v138 = vld [vmem:[%s0 + $0x8] sm:$0xff]
    %v139 = vld [vmem:[%s0 + $0x10] sm:$0xff]
    %v140 = vmul.f32 %v137, %v136
    %v141 = vmul.f32 %v138, %v136
    %v142 = vmul.f32 %v139, %v136
    %143 = vst [vmem:[#allocation3] sm:$0xff] %v140
    %144 = vst [vmem:[#allocation3 + $0x8] sm:$0xff] %v141
    %vm145 = vcmask 64512
    %146 = vst.msk [vmem:[#allocation3 + $0x10] sm:$0xff] %vm145, %v142
    // Predicated region
    $region38: #{tpu_custom_call.1} parent=1 // pred_check
      _
    $region39: #{tpu_custom_call.1} parent=1 // pred_check_branch
      %148 = sbr.rel (0) target = $region41
    $region40: #{tpu_custom_call.1} parent=1 // pred_region
      %150 = vsyncadd [#allocation4], 0
      %s152 = sshll.u32 [#allocation3], 4
      %s153 = int_to_ptr.vmem [resolvable:$true] %s152
      %s154 = sshll.u32 %s9, 4
      %s155 = int_to_ptr.hbm [resolvable:$true] %s154
      %157 = dma.vmem_to_hbm [thread:$0]  %s153, 384, %s155, [#allocation4]
    $region41: #{tpu_custom_call.1} parent=1 // pred_fallthru
      _
    // Predicated region
    $region42: #{tpu_custom_call.1} parent=1 // pred_check
      _
    $region43: #{tpu_custom_call.1} parent=1 // pred_check_branch
      %159 = sbr.rel (0) target = $region45
    $region44: #{tpu_custom_call.1} parent=1 // pred_region
      %161 = dma.done [#allocation4], 384
    $region45: #{tpu_custom_call.1} parent=1 // pred_fallthru
      _
    %162 = vsyncpa [#allocation4], 1

</llo_original>
